<compile_context>
chip_gen: v6e
topology: v6e:2x2x1
jax: 0.10.0
libtpu: 0.0.40
codegen_flags: <defaults>
</compile_context>

<pallas_src>
import functools

import jax
import jax.numpy as jnp
from jax.experimental import pallas as pl
from jax.experimental.pallas import tpu as pltpu

_LANE = 128


def _round_up(v, m):
    return ((v + m - 1) // m) * m


def _pad2(arr, rows, cols):
    return jnp.pad(arr, ((0, rows - arr.shape[0]), (0, cols - arr.shape[1])))


def _pick_tile(n_pad, requested, min_tiles=1):
    """Largest multiple of 128 that divides n_pad, is <= requested and leaves
    at least `min_tiles` tiles (so no extra padding beyond the 128 multiple)."""
    best = _LANE
    t = _LANE
    while t <= min(requested, n_pad):
        if n_pad % t == 0 and n_pad // t >= min_tiles:
            best = t
        t += _LANE
    return best


def _sage_agg_kernel(a_ref, xw_ref, self_ref, invdeg_ref, o_ref, acc_ref, *,
                     apply_relu):
    """One (row-tile i, adjacency-col-tile k) grid cell of a SAGE(mean) layer."""
    k = pl.program_id(1)

    @pl.when(k == 0)
    def _():
        acc_ref[...] = jnp.zeros_like(acc_ref)

    # Streamed aggregation: acc[i] += A01[i, k] @ (X @ W_neigh)[k]
    # A is stored int8 0/1 in HBM (halves the dominant stream); the cast to
    # bf16 is exact and hidden under the memory-bound DMA.
    a = a_ref[...].astype(jnp.bfloat16)
    acc_ref[...] += jnp.dot(a, xw_ref[...], preferred_element_type=jnp.float32)

    @pl.when(k == pl.num_programs(1) - 1)
    def _():
        # Exact f32 mean normalization, then fused self term + bias (+ ReLU).
        h = acc_ref[...] * invdeg_ref[...] + self_ref[...]
        if apply_relu:
            h = jnp.maximum(h, 0.0)
        o_ref[...] = h.astype(o_ref.dtype)


def _sage_layer(a01, inv_deg, xw_neigh, self_term, *, apply_relu, out_dtype,
                tm, tk):
    """a01: (Np, Np) int8 0/1; inv_deg: (Np, 1) f32; xw_neigh: (Np, Fout) bf16;
    self_term: (Np, Fout) f32."""
    nr, nc = a01.shape
    fout = xw_neigh.shape[1]
    grid = (nr // tm, nc // tk)

    cost = pl.CostEstimate(
        flops=2 * nr * nc * fout,
        transcendentals=0,
        bytes_accessed=(a01.size                                   # A streamed once
                        + grid[0] * xw_neigh.size * 2              # re-streamed per row tile
                        + self_term.size * 4 + inv_deg.size * 4
                        + nr * fout * jnp.dtype(out_dtype).itemsize),
    )

    kernel = functools.partial(_sage_agg_kernel, apply_relu=apply_relu)
    return pl.pallas_call(
        kernel,
        out_shape=jax.ShapeDtypeStruct((nr, fout), out_dtype),
        grid_spec=pltpu.PrefetchScalarGridSpec(
            num_scalar_prefetch=0,
            grid=grid,
            in_specs=[
                pl.BlockSpec((tm, tk), lambda i, k: (i, k)),       # A01 tile (int8)
                pl.BlockSpec((tk, fout), lambda i, k: (k, 0)),     # X @ W_neigh rows (bf16)
                pl.BlockSpec((tm, fout), lambda i, k: (i, 0)),     # X @ W_self + b   (f32)
                pl.BlockSpec((tm, 1), lambda i, k: (i, 0)),        # 1/deg            (f32)
            ],
            out_specs=pl.BlockSpec((tm, fout), lambda i, k: (i, 0)),
            scratch_shapes=[pltpu.VMEM((tm, fout), jnp.float32)],  # aggregation accumulator
        ),
        compiler_params=pltpu.CompilerParams(
            dimension_semantics=("parallel", "arbitrary"),
            vmem_limit_bytes=48 * 1024 * 1024,   # < v7x's 64 MiB physical VMEM
        ),
        cost_estimate=cost,
    )(a01, xw_neigh, self_term, inv_deg)


def sage_forward(adj, x, ws1, wn1, b1, ws2, wn2, b2, *, tm=512, tk=1024):
    """2-layer GraphSAGE(mean) forward.

    adj : (N, N) dense 0/1 adjacency, adj[i, j] = 1 iff edge j -> i (rows = dest).
          Padded columns MUST stay zero (invariant relied on for padded h1 rows).
    x   : (N, F_in) node features.
    ws*/wn*: weights pre-transposed to (F_in, F_out); b*: (1, F_out).
    tm/tk are upper bounds; actual tiles are clamped to divisors of the padded N
    and tm keeps >= 2 row tiles (megacore / v7x two-TC sharding).
    """
    n = x.shape[0]
    hid_f = ws1.shape[1]
    out_f = ws2.shape[1]

    n_pad = _round_up(n, _LANE)              # rectangular padding, no lcm blow-up
    tm = _pick_tile(n_pad, tm, min_tiles=2)
    tk = _pick_tile(n_pad, tk, min_tiles=1)

    hid_p = _round_up(hid_f, _LANE)
    out_p = _round_up(out_f, _LANE)

    bf16 = jnp.bfloat16
    f32dot = functools.partial(jnp.dot, preferred_element_type=jnp.float32)

    a01 = _pad2(adj, n_pad, n_pad).astype(jnp.int8)          # 0/1 adjacency, int8 HBM
    deg = jnp.sum(adj.astype(jnp.float32), axis=1, keepdims=True)
    inv_deg = 1.0 / jnp.maximum(deg, 1.0)                     # exact mean norm (f32)
    inv_deg = jnp.pad(inv_deg, ((0, n_pad - n), (0, 0)))

    x_p = _pad2(x.astype(jnp.float32), n_pad, x.shape[1])

    ws1_p = _pad2(ws1, ws1.shape[0], hid_p)
    wn1_p = _pad2(wn1, wn1.shape[0], hid_p)
    b1_p = _pad2(b1, 1, hid_p).astype(jnp.float32)
    ws2_p = _pad2(ws2, hid_p, out_p)
    wn2_p = _pad2(wn2, hid_p, out_p)
    b2_p = _pad2(b2, 1, out_p).astype(jnp.float32)

    # ---- Layer 1 (ReLU); bf16 intermediate halves h1's HBM traffic. ----
    xw1 = f32dot(x_p, wn1_p).astype(bf16)        # (Np, hid_p)  tiny XLA matmul
    self1 = f32dot(x_p, ws1_p) + b1_p            # (Np, hid_p)  f32
    h1 = _sage_layer(a01, inv_deg, xw1, self1,
                     apply_relu=True, out_dtype=bf16, tm=tm, tk=tk)
    # Padded rows of h1 equal relu(b1); harmless because padded columns of A are 0.

    # ---- Layer 2 (no activation); f32 output. ----
    xw2 = f32dot(h1, wn2_p).astype(bf16)         # (Np, out_p)
    self2 = f32dot(h1, ws2_p) + b2_p             # (Np, out_p)  f32
    h2 = _sage_layer(a01, inv_deg, xw2, self2,
                     apply_relu=False, out_dtype=jnp.float32, tm=tm, tk=tk)
    return h2[:n, :out_f]


def _reference_f32(adj, x, ws1, wn1, b1, ws2, wn2, b2):
    deg = jnp.maximum(jnp.sum(adj, axis=1, keepdims=True), 1.0)
    a_norm = adj / deg
    h1 = jnp.maximum(x @ ws1 + (a_norm @ x) @ wn1 + b1, 0.0)
    return h1 @ ws2 + (a_norm @ h1) @ wn2 + b2


def _reference_matched(adj, x, ws1, wn1, b1, ws2, wn2, b2):
    """Same numerics as the kernel path: exact 0/1 A (bf16 MXU operand), bf16
    X@W_neigh, f32 accumulation, exact f32 1/deg post-scale, bf16 h1."""
    bf = jnp.bfloat16
    f32dot = functools.partial(jnp.dot, preferred_element_type=jnp.float32)
    deg = jnp.maximum(jnp.sum(adj, axis=1, keepdims=True), 1.0)
    inv_deg = 1.0 / deg
    a_bf = adj.astype(bf)

    def layer(h, ws, wn, b, relu):
        xw = f32dot(h, wn).astype(bf)
        out = f32dot(h, ws) + b + f32dot(a_bf, xw) * inv_deg
        return jnp.maximum(out, 0.0) if relu else out

    h1 = layer(x, ws1, wn1, b1, True).astype(bf)
    return layer(h1, ws2, wn2, b2, False)


if __name__ == "__main__":
    # Small synthetic graph: 200 nodes (pads to 256 -> 2 row tiles of 128),
    # in_feats=8, hid_feats=32, out_feats=16.
    N, IN_F, HID_F, OUT_F = 200, 8, 32, 16

    key = jax.random.PRNGKey(0)
    k_adj, k_x, k1, k2 = jax.random.split(key, 4)

    # Random directed graph -> dense 0/1 adjacency (row = destination).
    adj = (jax.random.uniform(k_adj, (N, N)) < 0.3).astype(jnp.float32)
    adj = adj * (1.0 - jnp.eye(N, dtype=jnp.float32))   # drop self loops

    x = jax.random.normal(k_x, (N, IN_F), dtype=jnp.float32)

    def init_linear(k, fan_in, fan_out):
        scale = 1.0 / jnp.sqrt(jnp.float32(fan_in))
        return scale * jax.random.normal(k, (fan_in, fan_out), dtype=jnp.float32)

    ka, kb = jax.random.split(k1)
    ws1 = init_linear(ka, IN_F, HID_F)    # conv1.fc_self (pre-transposed)
    wn1 = init_linear(kb, IN_F, HID_F)    # conv1.fc_neigh
    b1 = jnp.zeros((1, HID_F), dtype=jnp.float32)

    kc, kd = jax.random.split(k2)
    ws2 = init_linear(kc, HID_F, OUT_F)   # conv2.fc_self
    wn2 = init_linear(kd, HID_F, OUT_F)   # conv2.fc_neigh
    b2 = jnp.zeros((1, OUT_F), dtype=jnp.float32)

    out = sage_forward(adj, x, ws1, wn1, b1, ws2, wn2, b2)
    out = jax.block_until_ready(out)
    assert out.shape == (N, OUT_F)

    # Tight check against a reference with the same bf16/f32-accum numerics.
    ref_m = _reference_matched(adj, x, ws1, wn1, b1, ws2, wn2, b2)
    assert jnp.allclose(out, ref_m, atol=2e-2, rtol=2e-2), \
        float(jnp.max(jnp.abs(out - ref_m)))

    # Loose check against the full-f32 reference (bf16 operands cost some ulps).
    ref_f = _reference_f32(adj, x, ws1, wn1, b1, ws2, wn2, b2)
    assert jnp.allclose(out, ref_f, atol=2e-1, rtol=2e-1), \
        float(jnp.max(jnp.abs(out - ref_f)))

    print("KERNEL_OK")
</pallas_src>

<mosaic_0001>
module attributes {stable_mosaic.version = 11 : i64} {
  func.func @_sage_agg_kernel(%arg0: i32, %arg1: i32, %arg2: memref<128x256xi8, #tpu.memory_space<vmem>>, %arg3: memref<256x128xbf16, #tpu.memory_space<vmem>>, %arg4: memref<128x128xf32, #tpu.memory_space<vmem>>, %arg5: memref<128x1xf32, #tpu.memory_space<vmem>>, %arg6: memref<128x128xbf16, #tpu.memory_space<vmem>>, %arg7: memref<128x128xf32, #tpu.memory_space<vmem>>) attributes {dimension_semantics = [#tpu.dimension_semantics<parallel>, #tpu.dimension_semantics<arbitrary>], iteration_bounds = array<i64: 2, 1>, scalar_prefetch = 0 : i64, scratch_operands = 1 : i64, tpu.core_type = #tpu.core_type<tc>, window_params = [{transform_indices = @transform_0, window_bounds = array<i64: 128, 256>}, {transform_indices = @transform_1, window_bounds = array<i64: 256, 128>}, {transform_indices = @transform_2, window_bounds = array<i64: 128, 128>}, {transform_indices = @transform_3, window_bounds = array<i64: 128, 1>}, {transform_indices = @transform_4, window_bounds = array<i64: 128, 128>}]} {
    %c0_i32 = arith.constant 0 : i32
    %0 = arith.cmpi eq, %arg1, %c0_i32 : i32
    %1 = arith.extui %0 : i1 to i32
    %c0_i32_0 = arith.constant 0 : i32
    %2 = arith.cmpi ne, %1, %c0_i32_0 : i32
    scf.if %2 {
      %cst_10 = arith.constant 0.000000e+00 : f32
      %13 = vector.broadcast %cst_10 : f32 to vector<128x128xf32>
      %c0_11 = arith.constant 0 : index
      %c0_12 = arith.constant 0 : index
      %14 = vector.load %arg7[%c0_11, %c0_12] : memref<128x128xf32, #tpu.memory_space<vmem>>, vector<128x128xf32>
      tpu.vector_store %arg7[%c0_11, %c0_12], %13 {strides = array<i32>} : memref<128x128xf32, #tpu.memory_space<vmem>>, vector<128x128xf32>,
    } else {
    }
    %c0 = arith.constant 0 : index
    %c0_1 = arith.constant 0 : index
    %3 = vector.load %arg2[%c0, %c0_1] : memref<128x256xi8, #tpu.memory_space<vmem>>, vector<128x256xi8>
    %4 = arith.sitofp %3 : vector<128x256xi8> to vector<128x256xbf16>
    %c0_2 = arith.constant 0 : index
    %c0_3 = arith.constant 0 : index
    %5 = vector.load %arg7[%c0_2, %c0_3] : memref<128x128xf32, #tpu.memory_space<vmem>>, vector<128x128xf32>
    %c0_4 = arith.constant 0 : index
    %c0_5 = arith.constant 0 : index
    %6 = vector.load %arg3[%c0_4, %c0_5] : memref<256x128xbf16, #tpu.memory_space<vmem>>, vector<256x128xbf16>
    %cst = arith.constant dense<0.000000e+00> : vector<128x128xf32>
    %7 = tpu.matmul %4, %6, %cst {dimension_numbers = #tpu.dot_dimension_numbers<[1], [0], [0], [1], [0, 0, 1, 1], [], []>} : vector<128x256xbf16>, vector<256x128xbf16>, vector<128x128xf32> -> vector<128x128xf32>
    %8 = arith.addf %5, %7 : vector<128x128xf32>
    %c0_6 = arith.constant 0 : index
    %c0_7 = arith.constant 0 : index
    %9 = vector.load %arg7[%c0_6, %c0_7] : memref<128x128xf32, #tpu.memory_space<vmem>>, vector<128x128xf32>
    tpu.vector_store %arg7[%c0_6, %c0_7], %8 {strides = array<i32>} : memref<128x128xf32, #tpu.memory_space<vmem>>, vector<128x128xf32>,
    %c0_i32_8 = arith.constant 0 : i32
    %10 = arith.cmpi eq, %arg1, %c0_i32_8 : i32
    %11 = arith.extui %10 : i1 to i32
    %c0_i32_9 = arith.constant 0 : i32
    %12 = arith.cmpi ne, %11, %c0_i32_9 : i32
    scf.if %12 {
      %c0_10 = arith.constant 0 : index
      %c0_11 = arith.constant 0 : index
      %13 = vector.load %arg7[%c0_10, %c0_11] : memref<128x128xf32, #tpu.memory_space<vmem>>, vector<128x128xf32>
      %c0_12 = arith.constant 0 : index
      %c0_13 = arith.constant 0 : index
      %14 = vector.load %arg5[%c0_12, %c0_13] : memref<128x1xf32, #tpu.memory_space<vmem>>, vector<128x1xf32>
      %15 = vector.broadcast %14 : vector<128x1xf32> to vector<128x128xf32>
      %16 = arith.mulf %13, %15 : vector<128x128xf32>
      %c0_14 = arith.constant 0 : index
      %c0_15 = arith.constant 0 : index
      %17 = vector.load %arg4[%c0_14, %c0_15] : memref<128x128xf32, #tpu.memory_space<vmem>>, vector<128x128xf32>
      %18 = arith.addf %16, %17 : vector<128x128xf32>
      %cst_16 = arith.constant 0.000000e+00 : f32
      %19 = vector.broadcast %cst_16 : f32 to vector<128x128xf32>
      %20 = arith.maximumf %18, %19 : vector<128x128xf32>
      %21 = arith.truncf %20 : vector<128x128xf32> to vector<128x128xbf16>
      %c0_17 = arith.constant 0 : index
      %c0_18 = arith.constant 0 : index
      %22 = vector.load %arg6[%c0_17, %c0_18] : memref<128x128xbf16, #tpu.memory_space<vmem>>, vector<128x128xbf16>
      tpu.vector_store %arg6[%c0_17, %c0_18], %21 {strides = array<i32>} : memref<128x128xbf16, #tpu.memory_space<vmem>>, vector<128x128xbf16>,
    } else {
    }
    return
  }
  func.func @transform_0(%arg0: i32, %arg1: i32) -> (i32, i32) {
    %c0_i32 = arith.constant 0 : i32
    return %arg0, %arg1 : i32, i32
  }
  func.func @transform_1(%arg0: i32, %arg1: i32) -> (i32, i32) {
    %c0_i32 = arith.constant 0 : i32
    %c0_i32_0 = arith.constant 0 : i32
    return %arg1, %c0_i32 : i32, i32
  }
  func.func @transform_2(%arg0: i32, %arg1: i32) -> (i32, i32) {
    %c0_i32 = arith.constant 0 : i32
    %c0_i32_0 = arith.constant 0 : i32
    return %arg0, %c0_i32 : i32, i32
  }
  func.func @transform_3(%arg0: i32, %arg1: i32) -> (i32, i32) {
    %c0_i32 = arith.constant 0 : i32
    %c0_i32_0 = arith.constant 0 : i32
    return %arg0, %c0_i32 : i32, i32
  }
  func.func @transform_4(%arg0: i32, %arg1: i32) -> (i32, i32) {
    %c0_i32 = arith.constant 0 : i32
    %c0_i32_0 = arith.constant 0 : i32
    return %arg0, %c0_i32 : i32, i32
  }
}

</mosaic_0001>

<llo_original>
// kernel: tpu_custom_call.1
$region0: #{tpu_custom_call.1}
  #allocation0 [shape = 'u32[]', space=smem, size = 0x4, offset = 0x4, fixed_abs, tag = 'smem constant byte address 0x4 - core index']
  #allocation1 [shape = 'u32[144,128]{1,0:T(1,128)}', space=vmem, size = 0x12000, scoped, tag = 'internal scratch']
  #allocation2 [shape = 'f32[128,128]{1,0:T(8,128)}', space=vmem, size = 0x10000, scoped, tag = 'scratch operand']
  %s0 = inlined_call_operand.hbm [shape: s8[256,256], index: 0, kind: input, shape index: {}]
  %s1 = inlined_call_operand.hbm [shape: bf16[256,128], index: 1, kind: input, shape index: {}]
  %s2 = inlined_call_operand.vmem [shape: f32[256,128], index: 2, kind: input, shape index: {}]
  %s3 = inlined_call_operand.vmem [shape: f32[256,1], index: 3, kind: input, shape index: {}]
  %s4 = inlined_call_operand.hbm [shape: bf16[256,128], index: 4, kind: output, shape index: {}]
  %s5 = sld [smem:[#allocation0]]
  $region65: #{tpu_custom_call.1} parent=0
    _
  %s7 = ssub.s32 1, %s5
  %s8 = scalar_select 0, %s7, %s5
  $region1: #{tpu_custom_call.1} parent=0
    #allocation3 [shape = 'u8[65536]{0}', space=vmem, size = 0x10000, scoped, tag = 'input window, operand 0']
    #allocation4 [shape = 's32[2]{0}', space=sflag, size = 0x8, scoped, tag = 'scoped memory for tpu_custom_call.1']
    #allocation5 [shape = 's32[2]{0}', space=sflag, size = 0x8, scoped, tag = 'scoped memory for tpu_custom_call.1']
    #allocation6 [shape = 'u8[65536]{0}', space=vmem, size = 0x10000, scoped, tag = 'input window, operand 1, single buffered']
    #allocation7 [shape = 's32[1]{0}', space=sflag, size = 0x4, scoped, tag = 'scoped memory for tpu_custom_call.1']
    #allocation8 [shape = 'u8[65536]{0}', space=vmem, size = 0x10000, scoped, tag = 'output window, operand 0']
    %9 = vsyncpa [#allocation4], 0
    %s10 = scalar_lea.sflag [#allocation4], 1
    %11 = vsyncpa %s10, 0
    %12 = vsyncpa [#allocation7], 0
    %13 = vsyncpa [#allocation5], 0
    %s14 = scalar_lea.sflag [#allocation5], 1
    %15 = vsyncpa %s14, 0
    loop: start=0, step=1, limit=4
    $region2: #{tpu_custom_call.1} parent=1 // loop_pre_header
      _
    $region3: #{tpu_custom_call.1} parent=1 // loop_header
      %s17 = sphi 0, %s21
      %p18 = scmp.ge.s32.totalorder %s17, 4
      %s24 = sphi 0, %s36
      %s25 = sphi 0, %s32
      %s26 = sphi 0, %s24
      %s27 = sphi 0, %s25
      %s28 = sphi 0, %s26
      %s29 = sphi 0, %s27
      %s41 = sphi 0, %s43
      %s44 = sphi 0, %s41
      %s45 = sphi 0, %s44
      %s61 = sphi 0, %s45
      %s67 = sphi 0, %s69
      %s70 = sphi 0, %s67
      %s71 = sphi 0, %s70
      %s87 = sphi 0, %s71
      %s93 = sphi 0, %s95
      %s96 = sphi 0, %s93
      %s97 = sphi 0, %s96
      %s113 = sphi 0, %s97
      %s119 = sphi 0, %s121
      %s122 = sphi 0, %s119
      %s123 = sphi 0, %s122
      %s139 = sphi 0, %s123
      %s145 = sphi 0, %s147
      %s148 = sphi 0, %s145
      %s149 = sphi 0, %s148
      %s165 = sphi 0, %s149
    $region4: #{tpu_custom_call.1} parent=1 // loop_header_branch
      %20 = sbr.rel (%p18) target = $region8
    $region5: #{tpu_custom_call.1} parent=1 // loop_body
      %s22 = ssub.s32 %s17, 1
      %s23 = ssub.s32 %s17, 2
      %s30 = sadd.s32 1, %s25
      %p31 = scmp.ge.s32.totalorder %s30, 1
      %s32 = scalar_select %p31, 0, %s30
      %s33 = sadd.s32 1, %s24
      %s34 = scalar_select %p31, %s33, %s24
      %p35 = scmp.ge.s32.totalorder %s34, 2
      %s36 = scalar_select %p35, 0, %s34
      %s37 = ssub.s32 %s24, %s36
      %s38 = ssub.s32 %s25, %s32
      %s39 = sor.u32 %s37, %s38
      %p40 = scmp.eq.s32.totalorder %s39, 0
      %s42 = sadd.s32 %s41, 1
      %s43 = scalar_select %p40, %s41, %s42
      %p46 = pneg %p40
      %p47 = scmp.eq.s32.totalorder %s17, 1
      %p48 = por %p46, %p47
      %p49 = scmp.ne.s32.totalorder %s41, %s44
      %p50 = scmp.eq.s32.totalorder %s17, 0
      %p51 = por %p49, %p50
      %p52 = scmp.ne.s32.totalorder %s41, %s44
      %p53 = scmp.eq.s32.totalorder %s22, 1
      %p54 = por %p52, %p53
      %p55 = scmp.ne.s32.totalorder %s44, %s45
      %p56 = scmp.eq.s32.totalorder %s22, 0
      %p57 = por %p55, %p56
      %p58 = scmp.ne.s32.totalorder %s44, %s45
      %p59 = scmp.eq.s32.totalorder %s23, 1
      %p60 = por %p58, %p59
      %p62 = scmp.ne.s32.totalorder %s45, %s61
      %p63 = scmp.eq.s32.totalorder %s23, 0
      %p64 = por %p62, %p63
      %s65 = ssub.s32 %s25, %s32
      %p66 = scmp.eq.s32.totalorder %s65, 0
      %s68 = sadd.s32 %s67, 1
      %s69 = scalar_select %p66, %s67, %s68
      %p72 = pneg %p66
      %p73 = scmp.eq.s32.totalorder %s17, 1
      %p74 = por %p72, %p73
      %p75 = scmp.ne.s32.totalorder %s67, %s70
      %p76 = scmp.eq.s32.totalorder %s17, 0
      %p77 = por %p75, %p76
      %p78 = scmp.ne.s32.totalorder %s67, %s70
      %p79 = scmp.eq.s32.totalorder %s22, 1
      %p80 = por %p78, %p79
      %p81 = scmp.ne.s32.totalorder %s70, %s71
      %p82 = scmp.eq.s32.totalorder %s22, 0
      %p83 = por %p81, %p82
      %p84 = scmp.ne.s32.totalorder %s70, %s71
      %p85 = scmp.eq.s32.totalorder %s23, 1
      %p86 = por %p84, %p85
      %p88 = scmp.ne.s32.totalorder %s71, %s87
      %p89 = scmp.eq.s32.totalorder %s23, 0
      %p90 = por %p88, %p89
      %s91 = ssub.s32 %s24, %s36
      %p92 = scmp.eq.s32.totalorder %s91, 0
      %s94 = sadd.s32 %s93, 1
      %s95 = scalar_select %p92, %s93, %s94
      %p98 = pneg %p92
      %p99 = scmp.eq.s32.totalorder %s17, 1
      %p100 = por %p98, %p99
      %p101 = scmp.ne.s32.totalorder %s93, %s96
      %p102 = scmp.eq.s32.totalorder %s17, 0
      %p103 = por %p101, %p102
      %p104 = scmp.ne.s32.totalorder %s93, %s96
      %p105 = scmp.eq.s32.totalorder %s22, 1
      %p106 = por %p104, %p105
      %p107 = scmp.ne.s32.totalorder %s96, %s97
      %p108 = scmp.eq.s32.totalorder %s22, 0
      %p109 = por %p107, %p108
      %p110 = scmp.ne.s32.totalorder %s96, %s97
      %p111 = scmp.eq.s32.totalorder %s23, 1
      %p112 = por %p110, %p111
      %p114 = scmp.ne.s32.totalorder %s97, %s113
      %p115 = scmp.eq.s32.totalorder %s23, 0
      %p116 = por %p114, %p115
      %s117 = ssub.s32 %s24, %s36
      %p118 = scmp.eq.s32.totalorder %s117, 0
      %s120 = sadd.s32 %s119, 1
      %s121 = scalar_select %p118, %s119, %s120
      %p124 = pneg %p118
      %p125 = scmp.eq.s32.totalorder %s17, 1
      %p126 = por %p124, %p125
      %p127 = scmp.ne.s32.totalorder %s119, %s122
      %p128 = scmp.eq.s32.totalorder %s17, 0
      %p129 = por %p127, %p128
      %p130 = scmp.ne.s32.totalorder %s119, %s122
      %p131 = scmp.eq.s32.totalorder %s22, 1
      %p132 = por %p130, %p131
      %p133 = scmp.ne.s32.totalorder %s122, %s123
      %p134 = scmp.eq.s32.totalorder %s22, 0
      %p135 = por %p133, %p134
      %p136 = scmp.ne.s32.totalorder %s122, %s123
      %p137 = scmp.eq.s32.totalorder %s23, 1
      %p138 = por %p136, %p137
      %p140 = scmp.ne.s32.totalorder %s123, %s139
      %p141 = scmp.eq.s32.totalorder %s23, 0
      %p142 = por %p140, %p141
      %s143 = ssub.s32 %s24, %s36
      %p144 = scmp.eq.s32.totalorder %s143, 0
      %s146 = sadd.s32 %s145, 1
      %s147 = scalar_select %p144, %s145, %s146
      %p150 = pneg %p144
      %p151 = scmp.eq.s32.totalorder %s17, 1
      %p152 = por %p150, %p151
      %p153 = scmp.ne.s32.totalorder %s145, %s148
      %p154 = scmp.eq.s32.totalorder %s17, 0
      %p155 = por %p153, %p154
      %p156 = scmp.ne.s32.totalorder %s145, %s148
      %p157 = scmp.eq.s32.totalorder %s22, 1
      %p158 = por %p156, %p157
      %p159 = scmp.ne.s32.totalorder %s148, %s149
      %p160 = scmp.eq.s32.totalorder %s22, 0
      %p161 = por %p159, %p160
      %p162 = scmp.ne.s32.totalorder %s148, %s149
      %p163 = scmp.eq.s32.totalorder %s23, 1
      %p164 = por %p162, %p163
      %p166 = scmp.ne.s32.totalorder %s149, %s165
      %p167 = scmp.eq.s32.totalorder %s23, 0
      %p168 = por %p166, %p167
      %p169 = scmp.le.s32.totalorder 1, %s17
      %p170 = scmp.lt.s32.totalorder %s17, 3
      %p171 = pnand %p169, %p170
      %p172 = pneg %p171
      // Predicated region
      $region9: #{tpu_custom_call.1} parent=5 // pred_check
        _
      $region10: #{tpu_custom_call.1} parent=5 // pred_check_branch
        %174 = sbr.rel (%p171) target = $region12
      $region11: #{tpu_custom_call.1} parent=5 // pred_region
        %s175 = ssub.s32 %s17, 1
        // Predicated region
        $region13: #{tpu_custom_call.1} parent=11 // pred_check
          %p176 = pneg %p83
        $region14: #{tpu_custom_call.1} parent=11 // pred_check_branch
          %178 = sbr.rel (%p176) target = $region16
        $region15: #{tpu_custom_call.1} parent=11 // pred_region
          %s179 = smul.u32 32, %s27
          %s181 = ssub.s32 2048, 2048
          %182 = vsyncadd [#allocation7], %s181
          %s183 = smul.addr %s179, 64
          %s184 = scalar_lea.hbm %s1, %s183
          %s185 = sshll.u32 [#allocation6], 4
          %s186 = int_to_ptr.vmem [resolvable:$true] %s185
          %191 = dma.hbm_to_vmem [thread:$0]  %s184, 2048, %s186, [#allocation7], 64, 64, 4
        $region16: #{tpu_custom_call.1} parent=11 // pred_fallthru
          _
      $region12: #{tpu_custom_call.1} parent=5 // pred_fallthru
        _
      %p192 = scmp.lt.s32.totalorder %s17, 2
      // Predicated region
      $region17: #{tpu_custom_call.1} parent=5 // pred_check
        %p193 = pneg %p192
      $region18: #{tpu_custom_call.1} parent=5 // pred_check_branch
        %195 = sbr.rel (%p193) target = $region20
      $region19: #{tpu_custom_call.1} parent=5 // pred_region
        // Predicated region
        $region21: #{tpu_custom_call.1} parent=19 // pred_check
          %p196 = pneg %p51
        $region22: #{tpu_custom_call.1} parent=19 // pred_check_branch
          %198 = sbr.rel (%p196) target = $region24
        $region23: #{tpu_custom_call.1} parent=19 // pred_region
          %s199 = sand.u32 %s41, 1
          %s200 = scalar_lea.sflag [#allocation4], %s199
          %s201 = sand.u32 %s41, 1
          %s202 = smul.addr %s201, 64
          %s203 = scalar_lea.vmem [#allocation3], %s202
          %s204 = smul.u32 4, %s24
          %s205 = smul.u32 2, %s25
          %s207 = ssub.s32 1024, 1024
          %208 = vsyncadd %s200, %s207
          %s209 = smul.addr %s204, 2
          %s210 = sadd.s32 %s205, %s209
          %s211 = smul.addr %s210, 128
          %s212 = scalar_lea.hbm %s0, %s211
          %s213 = sshll.u32 %s203, 4
          %s214 = int_to_ptr.vmem [resolvable:$true] %s213
          %219 = dma.hbm_to_vmem [thread:$0]  %s212, 1024, %s214, %s200, 256, 256, 16
        $region24: #{tpu_custom_call.1} parent=19 // pred_fallthru
          _
        // Predicated region
        $region25: #{tpu_custom_call.1} parent=19 // pred_check
          %p220 = pneg %p103
        $region26: #{tpu_custom_call.1} parent=19 // pred_check_branch
          %222 = sbr.rel (%p220) target = $region28
        $region27: #{tpu_custom_call.1} parent=19 // pred_region
          %s223 = smul.u32 16, %s24
          %p224 = scmp.lt.s32.totalorder %s223, 31
          %s225 = scalar_select %p224, %s223, 31
          %s226 = smul.addr %s225, 8
          %s227 = scalar_lea.vmem %s2, %s226
          %s228 = smul.u32 16, %s24
        $region28: #{tpu_custom_call.1} parent=19 // pred_fallthru
          _
        // Predicated region
        $region29: #{tpu_custom_call.1} parent=19 // pred_check
          %p229 = pneg %p129
        $region30: #{tpu_custom_call.1} parent=19 // pred_check_branch
          %231 = sbr.rel (%p229) target = $region32
        $region31: #{tpu_custom_call.1} parent=19 // pred_region
          %s232 = smul.u32 16, %s24
          %p233 = scmp.lt.s32.totalorder %s232, 31
          %s234 = scalar_select %p233, %s232, 31
          %s235 = smul.addr %s234, 8
          %s236 = scalar_lea.vmem %s3, %s235
          %s237 = smul.u32 16, %s24
        $region32: #{tpu_custom_call.1} parent=19 // pred_fallthru
          _
      $region20: #{tpu_custom_call.1} parent=5 // pred_fallthru
        _
      %p238 = scmp.le.s32.totalorder 1, %s17
      %p239 = scmp.lt.s32.totalorder %s17, 3
      %p240 = pnand %p238, %p239
      %p241 = pneg %p240
      // Predicated region
      $region33: #{tpu_custom_call.1} parent=5 // pred_check
        _
      $region34: #{tpu_custom_call.1} parent=5 // pred_check_branch
        %243 = sbr.rel (%p240) target = $region36
      $region35: #{tpu_custom_call.1} parent=5 // pred_region
        %s244 = ssub.s32 %s17, 1
        %s245 = sand.u32 %s44, 1
        %s246 = scalar_lea.sflag [#allocation4], %s245
        %s247 = sand.u32 %s44, 1
        %s248 = smul.addr %s247, 64
        %s249 = scalar_lea.vmem [#allocation3], %s248
        // Predicated region
        $region37: #{tpu_custom_call.1} parent=35 // pred_check
          %p250 = pneg %p57
        $region38: #{tpu_custom_call.1} parent=35 // pred_check_branch
          %252 = sbr.rel (%p250) target = $region40
        $region39: #{tpu_custom_call.1} parent=35 // pred_region
          %253 = dma.done %s246, 1024
        $region40: #{tpu_custom_call.1} parent=35 // pred_fallthru
          _
        // Predicated region
        $region41: #{tpu_custom_call.1} parent=35 // pred_check
          %p254 = pneg %p83
        $region42: #{tpu_custom_call.1} parent=35 // pred_check_branch
          %256 = sbr.rel (%p254) target = $region44
        $region43: #{tpu_custom_call.1} parent=35 // pred_region
          %257 = dma.done [#allocation7], 2048
        $region44: #{tpu_custom_call.1} parent=35 // pred_fallthru
          _
        %s258 = sand.u32 %s44, 1
        %s259 = scalar_lea.sflag [#allocation4], %s258
        %s260 = sand.u32 %s44, 1
        %s261 = smul.addr %s260, 64
        %s262 = scalar_lea.vmem [#allocation3], %s261
        %p263 = pneg %p57
        %p264 = pneg %p54
        %p265 = pneg %p83
        %p266 = pneg %p80
        %s267 = smul.u32 16, %s26
        %p268 = scmp.lt.s32.totalorder %s267, 31
        %s269 = scalar_select %p268, %s267, 31
        %s270 = smul.addr %s269, 8
        %s271 = scalar_lea.vmem %s2, %s270
        %p272 = pneg %p109
        %p273 = pneg %p106
        %s274 = smul.u32 16, %s26
        %p275 = scmp.lt.s32.totalorder %s274, 31
        %s276 = scalar_select %p275, %s274, 31
        %s277 = smul.addr %s276, 8
        %s278 = scalar_lea.vmem %s3, %s277
        %p279 = pneg %p135
        %p280 = pneg %p132
        %p281 = pneg %p161
        %p282 = pneg %p158
        %s283 = sand.u32 %s148, 1
        %s284 = scalar_lea.sflag [#allocation5], %s283
        %s285 = sand.u32 %s148, 1
        %s286 = smul.addr %s285, 64
        %s287 = scalar_lea.vmem [#allocation8], %s286
        %s288 = smul.u32 4, %s26
        %s289 = smul.u32 2, %s27
        %s290 = smul.u32 32, %s27
        %s291 = smul.u32 16, %s26
        %p292 = scmp.lt.s32.totalorder %s291, 31
        %s293 = scalar_select %p292, %s291, 31
        %s294 = smul.addr %s293, 8
        %s295 = scalar_lea.vmem %s2, %s294
        %s296 = smul.u32 16, %s26
        %s297 = smul.u32 16, %s26
        %p298 = scmp.lt.s32.totalorder %s297, 31
        %s299 = scalar_select %p298, %s297, 31
        %s300 = smul.addr %s299, 8
        %s301 = scalar_lea.vmem %s3, %s300
        %s302 = smul.u32 16, %s26
        %s303 = smul.u32 16, %s26
        %p305 = scmp.eq.s32.totalorder %s27, 0
        // Predicated region
        $region45: #{tpu_custom_call.1} parent=35 // pred_check
          %p306 = pneg %p305
        $region46: #{tpu_custom_call.1} parent=35 // pred_check_branch
          %308 = sbr.rel (%p306) target = $region48
        $region47: #{tpu_custom_call.1} parent=35 // pred_region
          %309 = vst [vmem:[#allocation2] sm:$0xff] 0.0
          %310 = vst [vmem:[#allocation2 + $0x8] sm:$0xff] 0.0
          %311 = vst [vmem:[#allocation2 + $0x10] sm:$0xff] 0.0
          %312 = vst [vmem:[#allocation2 + $0x18] sm:$0xff] 0.0
          %313 = vst [vmem:[#allocation2 + $0x20] sm:$0xff] 0.0
          %314 = vst [vmem:[#allocation2 + $0x28] sm:$0xff] 0.0
          %315 = vst [vmem:[#allocation2 + $0x30] sm:$0xff] 0.0
          %316 = vst [vmem:[#allocation2 + $0x38] sm:$0xff] 0.0
          %317 = vst [vmem:[#allocation2 + $0x40] sm:$0xff] 0.0
          %318 = vst [vmem:[#allocation2 + $0x48] sm:$0xff] 0.0
          %319 = vst [vmem:[#allocation2 + $0x50] sm:$0xff] 0.0
          %320 = vst [vmem:[#allocation2 + $0x58] sm:$0xff] 0.0
          %321 = vst [vmem:[#allocation2 + $0x60] sm:$0xff] 0.0
          %322 = vst [vmem:[#allocation2 + $0x68] sm:$0xff] 0.0
          %323 = vst [vmem:[#allocation2 + $0x70] sm:$0xff] 0.0
          %324 = vst [vmem:[#allocation2 + $0x78] sm:$0xff] 0.0
        $region48: #{tpu_custom_call.1} parent=35 // pred_fallthru
          _
        %v325 = vld [vmem:[%s249] sm:$0xff]
        %v326 = vld [vmem:[%s249 + $0x8] sm:$0xff]
        %v327 = vld [vmem:[%s249 + $0x10] sm:$0xff]
        %v328 = vld [vmem:[%s249 + $0x18] sm:$0xff]
        %v329 = vld [vmem:[%s249 + $0x20] sm:$0xff]
        %v330 = vld [vmem:[%s249 + $0x28] sm:$0xff]
        %v331 = vld [vmem:[%s249 + $0x30] sm:$0xff]
        %v332 = vld [vmem:[%s249 + $0x38] sm:$0xff]
        %v333 = vunpack.c.l.s8.bf16 %v325
        %v334 = vunpack.c.l.s8.bf16 %v326
        %v335 = vunpack.c.h.s8.bf16 %v325
        %v336 = vunpack.c.h.s8.bf16 %v326
        %v337 = vunpack.c.l.s8.bf16 %v327
        %v338 = vunpack.c.l.s8.bf16 %v328
        %v339 = vunpack.c.h.s8.bf16 %v327
        %v340 = vunpack.c.h.s8.bf16 %v328
        %v341 = vunpack.c.l.s8.bf16 %v329
        %v342 = vunpack.c.l.s8.bf16 %v330
        %v343 = vunpack.c.h.s8.bf16 %v329
        %v344 = vunpack.c.h.s8.bf16 %v330
        %v345 = vunpack.c.l.s8.bf16 %v331
        %v346 = vunpack.c.l.s8.bf16 %v332
        %v347 = vunpack.c.h.s8.bf16 %v331
        %v348 = vunpack.c.h.s8.bf16 %v332
        %v349 = vld [vmem:[#allocation2] sm:$0xff]
        %v350 = vld [vmem:[#allocation2 + $0x8] sm:$0xff]
        %v351 = vld [vmem:[#allocation2 + $0x10] sm:$0xff]
        %v352 = vld [vmem:[#allocation2 + $0x18] sm:$0xff]
        %v353 = vld [vmem:[#allocation2 + $0x20] sm:$0xff]
        %v354 = vld [vmem:[#allocation2 + $0x28] sm:$0xff]
        %v355 = vld [vmem:[#allocation2 + $0x30] sm:$0xff]
        %v356 = vld [vmem:[#allocation2 + $0x38] sm:$0xff]
        %v357 = vld [vmem:[#allocation2 + $0x40] sm:$0xff]
        %v358 = vld [vmem:[#allocation2 + $0x48] sm:$0xff]
        %v359 = vld [vmem:[#allocation2 + $0x50] sm:$0xff]
        %v360 = vld [vmem:[#allocation2 + $0x58] sm:$0xff]
        %v361 = vld [vmem:[#allocation2 + $0x60] sm:$0xff]
        %v362 = vld [vmem:[#allocation2 + $0x68] sm:$0xff]
        %v363 = vld [vmem:[#allocation2 + $0x70] sm:$0xff]
        %v364 = vld [vmem:[#allocation2 + $0x78] sm:$0xff]
        %v365 = vld [vmem:[#allocation6] sm:$0xf]
        %v366 = vld [vmem:[#allocation6 + $0x4] sm:$0xf]
        %v367 = vld [vmem:[#allocation6 + $0x8] sm:$0xf]
        %v368 = vld [vmem:[#allocation6 + $0xc] sm:$0xf]
        %v369 = vld [vmem:[#allocation6 + $0x10] sm:$0xf]
        %v370 = vld [vmem:[#allocation6 + $0x14] sm:$0xf]
        %v371 = vld [vmem:[#allocation6 + $0x18] sm:$0xf]
        %v372 = vld [vmem:[#allocation6 + $0x1c] sm:$0xf]
        %v373 = vld [vmem:[#allocation6 + $0x20] sm:$0xf]
        %v374 = vld [vmem:[#allocation6 + $0x24] sm:$0xf]
        %v375 = vld [vmem:[#allocation6 + $0x28] sm:$0xf]
        %v376 = vld [vmem:[#allocation6 + $0x2c] sm:$0xf]
        %v377 = vld [vmem:[#allocation6 + $0x30] sm:$0xf]
        %v378 = vld [vmem:[#allocation6 + $0x34] sm:$0xf]
        %v379 = vld [vmem:[#allocation6 + $0x38] sm:$0xf]
        %v380 = vld [vmem:[#allocation6 + $0x3c] sm:$0xf]
        %v381 = vld [vmem:[#allocation6 + $0x40] sm:$0xf]
        %v382 = vld [vmem:[#allocation6 + $0x44] sm:$0xf]
        %v383 = vld [vmem:[#allocation6 + $0x48] sm:$0xf]
        %v384 = vld [vmem:[#allocation6 + $0x4c] sm:$0xf]
        %v385 = vld [vmem:[#allocation6 + $0x50] sm:$0xf]
        %v386 = vld [vmem:[#allocation6 + $0x54] sm:$0xf]
        %v387 = vld [vmem:[#allocation6 + $0x58] sm:$0xf]
        %v388 = vld [vmem:[#allocation6 + $0x5c] sm:$0xf]
        %v389 = vld [vmem:[#allocation6 + $0x60] sm:$0xf]
        %v390 = vld [vmem:[#allocation6 + $0x64] sm:$0xf]
        %v391 = vld [vmem:[#allocation6 + $0x68] sm:$0xf]
        %v392 = vld [vmem:[#allocation6 + $0x6c] sm:$0xf]
        %v393 = vld [vmem:[#allocation6 + $0x70] sm:$0xf]
        %v394 = vld [vmem:[#allocation6 + $0x74] sm:$0xf]
        %v395 = vld [vmem:[#allocation6 + $0x78] sm:$0xf]
        %v396 = vld [vmem:[#allocation6 + $0x7c] sm:$0xf]
        %v429 = vunpack.c.l.b16 %v365
        %v430 = vunpack.c.l.b16 %v366
        %v431 = vunpack.c.l.b16 %v367
        %v432 = vunpack.c.l.b16 %v368
        %v433 = vunpack.c.l.b16 %v369
        %v434 = vunpack.c.l.b16 %v370
        %v435 = vunpack.c.l.b16 %v371
        %v436 = vunpack.c.l.b16 %v372
        %v437 = vunpack.c.l.b16 %v373
        %v438 = vunpack.c.l.b16 %v374
        %v439 = vunpack.c.l.b16 %v375
        %v440 = vunpack.c.l.b16 %v376
        %v441 = vunpack.c.l.b16 %v377
        %v442 = vunpack.c.l.b16 %v378
        %v443 = vunpack.c.l.b16 %v379
        %v444 = vunpack.c.l.b16 %v380
        %v445 = vunpack.c.l.b16 %v381
        %v446 = vunpack.c.l.b16 %v382
        %v447 = vunpack.c.l.b16 %v383
        %v448 = vunpack.c.l.b16 %v384
        %v449 = vunpack.c.l.b16 %v385
        %v450 = vunpack.c.l.b16 %v386
        %v451 = vunpack.c.l.b16 %v387
        %v452 = vunpack.c.l.b16 %v388
        %v453 = vunpack.c.l.b16 %v389
        %v454 = vunpack.c.l.b16 %v390
        %v455 = vunpack.c.l.b16 %v391
        %v456 = vunpack.c.l.b16 %v392
        %v457 = vunpack.c.l.b16 %v393
        %v458 = vunpack.c.l.b16 %v394
        %v459 = vunpack.c.l.b16 %v395
        %v460 = vunpack.c.l.b16 %v396
        %v461 = vpack.c.b16 %v430, %v429
        %v462 = vpack.c.b16 %v432, %v431
        %v463 = vpack.c.b16 %v434, %v433
        %v464 = vpack.c.b16 %v436, %v435
        %v465 = vpack.c.b16 %v438, %v437
        %v466 = vpack.c.b16 %v440, %v439
        %v467 = vpack.c.b16 %v442, %v441
        %v468 = vpack.c.b16 %v444, %v443
        %v469 = vpack.c.b16 %v446, %v445
        %v470 = vpack.c.b16 %v448, %v447
        %v471 = vpack.c.b16 %v450, %v449
        %v472 = vpack.c.b16 %v452, %v451
        %v473 = vpack.c.b16 %v454, %v453
        %v474 = vpack.c.b16 %v456, %v455
        %v475 = vpack.c.b16 %v458, %v457
        %v476 = vpack.c.b16 %v460, %v459
        %493 = vmatprep.subr.bf16.mxu0 0
        %494 = vmatpush1.bf16.msra.mxu0 %v468
        %495 = vmatprep.subr.bf16.mxu0 0
        %496 = vmatpush1.bf16.msra.mxu0 %v467
        %497 = vmatprep.subr.bf16.mxu0 0
        %498 = vmatpush1.bf16.msra.mxu0 %v466
        %499 = vmatprep.subr.bf16.mxu0 0
        %500 = vmatpush1.bf16.msra.mxu0 %v465
        %501 = vmatprep.subr.bf16.mxu0 0
        %502 = vmatpush1.bf16.msra.mxu0 %v464
        %503 = vmatprep.subr.bf16.mxu0 0
        %504 = vmatpush1.bf16.msra.mxu0 %v463
        %505 = vmatprep.subr.bf16.mxu0 0
        %506 = vmatpush1.bf16.msra.mxu0 %v462
        %507 = vmatprep.subr.bf16.mxu0 0
        %508 = vmatpush1.bf16.msra.mxu0 %v461
        %509 = vmatprep.subr.bf16.mxu0 0
        %510 = vmatpush2.bf16.msra.mxu0 %v476
        %511 = vmatprep.subr.bf16.mxu0 0
        %512 = vmatpush2.bf16.msra.mxu0 %v475
        %513 = vmatprep.subr.bf16.mxu0 0
        %514 = vmatpush2.bf16.msra.mxu0 %v474
        %515 = vmatprep.subr.bf16.mxu0 0
        %516 = vmatpush2.bf16.msra.mxu0 %v473
        %517 = vmatprep.subr.bf16.mxu0 0
        %518 = vmatpush2.bf16.msra.mxu0 %v472
        %519 = vmatprep.subr.bf16.mxu0 0
        %520 = vmatpush2.bf16.msra.mxu0 %v471
        %521 = vmatprep.subr.bf16.mxu0 0
        %522 = vmatpush2.bf16.msra.mxu0 %v470
        %523 = vmatprep.subr.bf16.mxu0 0
        %524 = vmatpush2.bf16.msra.mxu0 %v469
        %525 = vmatprep.mubr.bf16.mxu0 %v334
        %526 = vmatmul.mubr.bf16.gmra.mxu0 %v333
        %v527 = vpop.f32.mrf.mxu0
        %v528 = vadd.f32 0.0, %v527
        %v529 = vpop.f32.mrf.mxu0
        %v530 = vpop.f32.mrf.mxu0
        %v531 = vadd.f32 0.0, %v530
        %v532 = vpop.f32.mrf.mxu0
        %533 = vmatprep.mubr.bf16.mxu0 %v336
        %534 = vmatmul.mubr.bf16.gmra.mxu0 %v335
        %v535 = vpop.f32.mrf.mxu0
        %v536 = vadd.f32 0.0, %v535
        %v537 = vpop.f32.mrf.mxu0
        %v538 = vpop.f32.mrf.mxu0
        %v539 = vadd.f32 0.0, %v538
        %v540 = vpop.f32.mrf.mxu0
        %541 = vmatprep.mubr.bf16.mxu0 %v338
        %542 = vmatmul.mubr.bf16.gmra.mxu0 %v337
        %v543 = vpop.f32.mrf.mxu0
        %v544 = vadd.f32 0.0, %v543
        %v545 = vpop.f32.mrf.mxu0
        %v546 = vpop.f32.mrf.mxu0
        %v547 = vadd.f32 0.0, %v546
        %v548 = vpop.f32.mrf.mxu0
        %549 = vmatprep.mubr.bf16.mxu0 %v340
        %550 = vmatmul.mubr.bf16.gmra.mxu0 %v339
        %v551 = vpop.f32.mrf.mxu0
        %v552 = vadd.f32 0.0, %v551
        %v553 = vpop.f32.mrf.mxu0
        %v554 = vpop.f32.mrf.mxu0
        %v555 = vadd.f32 0.0, %v554
        %v556 = vpop.f32.mrf.mxu0
        %557 = vmatprep.mubr.bf16.mxu0 %v342
        %558 = vmatmul.mubr.bf16.gmra.mxu0 %v341
        %v559 = vpop.f32.mrf.mxu0
        %v560 = vadd.f32 0.0, %v559
        %v561 = vpop.f32.mrf.mxu0
        %v562 = vpop.f32.mrf.mxu0
        %v563 = vadd.f32 0.0, %v562
        %v564 = vpop.f32.mrf.mxu0
        %565 = vmatprep.mubr.bf16.mxu0 %v344
        %566 = vmatmul.mubr.bf16.gmra.mxu0 %v343
        %v567 = vpop.f32.mrf.mxu0
        %v568 = vadd.f32 0.0, %v567
        %v569 = vpop.f32.mrf.mxu0
        %v570 = vpop.f32.mrf.mxu0
        %v571 = vadd.f32 0.0, %v570
        %v572 = vpop.f32.mrf.mxu0
        %573 = vmatprep.mubr.bf16.mxu0 %v346
        %574 = vmatmul.mubr.bf16.gmra.mxu0 %v345
        %v575 = vpop.f32.mrf.mxu0
        %v576 = vadd.f32 0.0, %v575
        %v577 = vpop.f32.mrf.mxu0
        %v578 = vpop.f32.mrf.mxu0
        %v579 = vadd.f32 0.0, %v578
        %v580 = vpop.f32.mrf.mxu0
        %581 = vmatprep.mubr.bf16.mxu0 %v348
        %582 = vmatmul.mubr.bf16.gmra.mxu0 %v347
        %v583 = vpop.f32.mrf.mxu0
        %v584 = vadd.f32 0.0, %v583
        %v585 = vpop.f32.mrf.mxu0
        %v586 = vpop.f32.mrf.mxu0
        %v587 = vadd.f32 0.0, %v586
        %v588 = vpop.f32.mrf.mxu0
        %589 = vdwg.mxu0
        %v590 = vadd.f32 %v349, %v528
        %v591 = vadd.f32 %v350, %v531
        %v592 = vadd.f32 %v351, %v536
        %v593 = vadd.f32 %v352, %v539
        %v594 = vadd.f32 %v353, %v544
        %v595 = vadd.f32 %v354, %v547
        %v596 = vadd.f32 %v355, %v552
        %v597 = vadd.f32 %v356, %v555
        %v598 = vadd.f32 %v357, %v560
        %v599 = vadd.f32 %v358, %v563
        %v600 = vadd.f32 %v359, %v568
        %v601 = vadd.f32 %v360, %v571
        %v602 = vadd.f32 %v361, %v576
        %v603 = vadd.f32 %v362, %v579
        %v604 = vadd.f32 %v363, %v584
        %v605 = vadd.f32 %v364, %v587
        %606 = vst [vmem:[#allocation2] sm:$0xff] %v590
        %607 = vst [vmem:[#allocation2 + $0x8] sm:$0xff] %v591
        %608 = vst [vmem:[#allocation2 + $0x10] sm:$0xff] %v592
        %609 = vst [vmem:[#allocation2 + $0x18] sm:$0xff] %v593
        %610 = vst [vmem:[#allocation2 + $0x20] sm:$0xff] %v594
        %611 = vst [vmem:[#allocation2 + $0x28] sm:$0xff] %v595
        %612 = vst [vmem:[#allocation2 + $0x30] sm:$0xff] %v596
        %613 = vst [vmem:[#allocation2 + $0x38] sm:$0xff] %v597
        %614 = vst [vmem:[#allocation2 + $0x40] sm:$0xff] %v598
        %615 = vst [vmem:[#allocation2 + $0x48] sm:$0xff] %v599
        %616 = vst [vmem:[#allocation2 + $0x50] sm:$0xff] %v600
        %617 = vst [vmem:[#allocation2 + $0x58] sm:$0xff] %v601
        %618 = vst [vmem:[#allocation2 + $0x60] sm:$0xff] %v602
        %619 = vst [vmem:[#allocation2 + $0x68] sm:$0xff] %v603
        %620 = vst [vmem:[#allocation2 + $0x70] sm:$0xff] %v604
        %621 = vst [vmem:[#allocation2 + $0x78] sm:$0xff] %v605
        // Predicated region
        $region49: #{tpu_custom_call.1} parent=35 // pred_check
          %p622 = pneg %p305
        $region50: #{tpu_custom_call.1} parent=35 // pred_check_branch
          %624 = sbr.rel (%p622) target = $region52
        $region51: #{tpu_custom_call.1} parent=35 // pred_region
          %v625 = vld [vmem:[#allocation2] sm:$0xff]
          %v626 = vld [vmem:[#allocation2 + $0x8] sm:$0xff]
          %v627 = vld [vmem:[#allocation2 + $0x10] sm:$0xff]
          %v628 = vld [vmem:[#allocation2 + $0x18] sm:$0xff]
          %v629 = vld [vmem:[#allocation2 + $0x20] sm:$0xff]
          %v630 = vld [vmem:[#allocation2 + $0x28] sm:$0xff]
          %v631 = vld [vmem:[#allocation2 + $0x30] sm:$0xff]
          %v632 = vld [vmem:[#allocation2 + $0x38] sm:$0xff]
          %v633 = vld [vmem:[#allocation2 + $0x40] sm:$0xff]
          %v634 = vld [vmem:[#allocation2 + $0x48] sm:$0xff]
          %v635 = vld [vmem:[#allocation2 + $0x50] sm:$0xff]
          %v636 = vld [vmem:[#allocation2 + $0x58] sm:$0xff]
          %v637 = vld [vmem:[#allocation2 + $0x60] sm:$0xff]
          %v638 = vld [vmem:[#allocation2 + $0x68] sm:$0xff]
          %v639 = vld [vmem:[#allocation2 + $0x70] sm:$0xff]
          %v640 = vld [vmem:[#allocation2 + $0x78] sm:$0xff]
          %v641 = vld [vmem:[%s301] sm:$0xff]
          %v642 = vld [vmem:[%s301 + $0x8] sm:$0xff]
          %v643 = vld [vmem:[%s301 + $0x10] sm:$0xff]
          %v644 = vld [vmem:[%s301 + $0x18] sm:$0xff]
          %v645 = vld [vmem:[%s301 + $0x20] sm:$0xff]
          %v646 = vld [vmem:[%s301 + $0x28] sm:$0xff]
          %v647 = vld [vmem:[%s301 + $0x30] sm:$0xff]
          %v648 = vld [vmem:[%s301 + $0x38] sm:$0xff]
          %v649 = vld [vmem:[%s301 + $0x40] sm:$0xff]
          %v650 = vld [vmem:[%s301 + $0x48] sm:$0xff]
          %v651 = vld [vmem:[%s301 + $0x50] sm:$0xff]
          %v652 = vld [vmem:[%s301 + $0x58] sm:$0xff]
          %v653 = vld [vmem:[%s301 + $0x60] sm:$0xff]
          %v654 = vld [vmem:[%s301 + $0x68] sm:$0xff]
          %v655 = vld [vmem:[%s301 + $0x70] sm:$0xff]
          %v656 = vld [vmem:[%s301 + $0x78] sm:$0xff]
          %658 = vset.pattern.permute.xlu0 0
          %659 = vperm.xlu0 %658, %v641
          %v660 = vpop.permute.xlu0 %659
          %663 = vset.pattern.permute.xlu0 0
          %664 = vperm.xlu0 %663, %v642
          %v665 = vpop.permute.xlu0 %664
          %668 = vset.pattern.permute.xlu0 0
          %669 = vperm.xlu0 %668, %v643
          %v670 = vpop.permute.xlu0 %669
          %673 = vset.pattern.permute.xlu0 0
          %674 = vperm.xlu0 %673, %v644
          %v675 = vpop.permute.xlu0 %674
          %678 = vset.pattern.permute.xlu0 0
          %679 = vperm.xlu0 %678, %v645
          %v680 = vpop.permute.xlu0 %679
          %683 = vset.pattern.permute.xlu0 0
          %684 = vperm.xlu0 %683, %v646
          %v685 = vpop.permute.xlu0 %684
          %688 = vset.pattern.permute.xlu0 0
          %689 = vperm.xlu0 %688, %v647
          %v690 = vpop.permute.xlu0 %689
          %693 = vset.pattern.permute.xlu0 0
          %694 = vperm.xlu0 %693, %v648
          %v695 = vpop.permute.xlu0 %694
          %698 = vset.pattern.permute.xlu0 0
          %699 = vperm.xlu0 %698, %v649
          %v700 = vpop.permute.xlu0 %699
          %703 = vset.pattern.permute.xlu0 0
          %704 = vperm.xlu0 %703, %v650
          %v705 = vpop.permute.xlu0 %704
          %708 = vset.pattern.permute.xlu0 0
          %709 = vperm.xlu0 %708, %v651
          %v710 = vpop.permute.xlu0 %709
          %713 = vset.pattern.permute.xlu0 0
          %714 = vperm.xlu0 %713, %v652
          %v715 = vpop.permute.xlu0 %714
          %718 = vset.pattern.permute.xlu0 0
          %719 = vperm.xlu0 %718, %v653
          %v720 = vpop.permute.xlu0 %719
          %723 = vset.pattern.permute.xlu0 0
          %724 = vperm.xlu0 %723, %v654
          %v725 = vpop.permute.xlu0 %724
          %728 = vset.pattern.permute.xlu0 0
          %729 = vperm.xlu0 %728, %v655
          %v730 = vpop.permute.xlu0 %729
          %733 = vset.pattern.permute.xlu0 0
          %734 = vperm.xlu0 %733, %v656
          %v735 = vpop.permute.xlu0 %734
          %v737 = vmul.f32 %v625, %v660
          %v738 = vmul.f32 %v626, %v665
          %v739 = vmul.f32 %v627, %v670
          %v740 = vmul.f32 %v628, %v675
          %v741 = vmul.f32 %v629, %v680
          %v742 = vmul.f32 %v630, %v685
          %v743 = vmul.f32 %v631, %v690
          %v744 = vmul.f32 %v632, %v695
          %v745 = vmul.f32 %v633, %v700
          %v746 = vmul.f32 %v634, %v705
          %v747 = vmul.f32 %v635, %v710
          %v748 = vmul.f32 %v636, %v715
          %v749 = vmul.f32 %v637, %v720
          %v750 = vmul.f32 %v638, %v725
          %v751 = vmul.f32 %v639, %v730
          %v752 = vmul.f32 %v640, %v735
          %v753 = vld [vmem:[%s295] sm:$0xff]
          %v754 = vld [vmem:[%s295 + $0x8] sm:$0xff]
          %v755 = vld [vmem:[%s295 + $0x10] sm:$0xff]
          %v756 = vld [vmem:[%s295 + $0x18] sm:$0xff]
          %v757 = vld [vmem:[%s295 + $0x20] sm:$0xff]
          %v758 = vld [vmem:[%s295 + $0x28] sm:$0xff]
          %v759 = vld [vmem:[%s295 + $0x30] sm:$0xff]
          %v760 = vld [vmem:[%s295 + $0x38] sm:$0xff]
          %v761 = vld [vmem:[%s295 + $0x40] sm:$0xff]
          %v762 = vld [vmem:[%s295 + $0x48] sm:$0xff]
          %v763 = vld [vmem:[%s295 + $0x50] sm:$0xff]
          %v764 = vld [vmem:[%s295 + $0x58] sm:$0xff]
          %v765 = vld [vmem:[%s295 + $0x60] sm:$0xff]
          %v766 = vld [vmem:[%s295 + $0x68] sm:$0xff]
          %v767 = vld [vmem:[%s295 + $0x70] sm:$0xff]
          %v768 = vld [vmem:[%s295 + $0x78] sm:$0xff]
          %v769 = vadd.f32 %v737, %v753
          %v770 = vadd.f32 %v738, %v754
          %v771 = vadd.f32 %v739, %v755
          %v772 = vadd.f32 %v740, %v756
          %v773 = vadd.f32 %v741, %v757
          %v774 = vadd.f32 %v742, %v758
          %v775 = vadd.f32 %v743, %v759
          %v776 = vadd.f32 %v744, %v760
          %v777 = vadd.f32 %v745, %v761
          %v778 = vadd.f32 %v746, %v762
          %v779 = vadd.f32 %v747, %v763
          %v780 = vadd.f32 %v748, %v764
          %v781 = vadd.f32 %v749, %v765
          %v782 = vadd.f32 %v750, %v766
          %v783 = vadd.f32 %v751, %v767
          %v784 = vadd.f32 %v752, %v768
          %v785 = vmax.f32 %v769, 0.0
          %v786 = vmax.f32 %v770, 0.0
          %v787 = vmax.f32 %v771, 0.0
          %v788 = vmax.f32 %v772, 0.0
          %v789 = vmax.f32 %v773, 0.0
          %v790 = vmax.f32 %v774, 0.0
          %v791 = vmax.f32 %v775, 0.0
          %v792 = vmax.f32 %v776, 0.0
          %v793 = vmax.f32 %v777, 0.0
          %v794 = vmax.f32 %v778, 0.0
          %v795 = vmax.f32 %v779, 0.0
          %v796 = vmax.f32 %v780, 0.0
          %v797 = vmax.f32 %v781, 0.0
          %v798 = vmax.f32 %v782, 0.0
          %v799 = vmax.f32 %v783, 0.0
          %v800 = vmax.f32 %v784, 0.0
          %v801 = vpack.c.bf16 %v786, %v785
          %v802 = vpack.c.bf16 %v788, %v787
          %v803 = vpack.c.bf16 %v790, %v789
          %v804 = vpack.c.bf16 %v792, %v791
          %v805 = vpack.c.bf16 %v794, %v793
          %v806 = vpack.c.bf16 %v796, %v795
          %v807 = vpack.c.bf16 %v798, %v797
          %v808 = vpack.c.bf16 %v800, %v799
          %v817 = vunpack.c.l.b16 %v801
          %v818 = vunpack.c.h.b16 %v801
          %v819 = vunpack.c.l.b16 %v802
          %v820 = vunpack.c.h.b16 %v802
          %v821 = vunpack.c.l.b16 %v803
          %v822 = vunpack.c.h.b16 %v803
          %v823 = vunpack.c.l.b16 %v804
          %v824 = vunpack.c.h.b16 %v804
          %v825 = vunpack.c.l.b16 %v805
          %v826 = vunpack.c.h.b16 %v805
          %v827 = vunpack.c.l.b16 %v806
          %v828 = vunpack.c.h.b16 %v806
          %v829 = vunpack.c.l.b16 %v807
          %v830 = vunpack.c.h.b16 %v807
          %v831 = vunpack.c.l.b16 %v808
          %v832 = vunpack.c.h.b16 %v808
          %v833 = vpack.c.b16 %v817, %v817
          %v834 = vpack.c.b16 %v818, %v818
          %v835 = vpack.c.b16 %v819, %v819
          %v836 = vpack.c.b16 %v820, %v820
          %v837 = vpack.c.b16 %v821, %v821
          %v838 = vpack.c.b16 %v822, %v822
          %v839 = vpack.c.b16 %v823, %v823
          %v840 = vpack.c.b16 %v824, %v824
          %v841 = vpack.c.b16 %v825, %v825
          %v842 = vpack.c.b16 %v826, %v826
          %v843 = vpack.c.b16 %v827, %v827
          %v844 = vpack.c.b16 %v828, %v828
          %v845 = vpack.c.b16 %v829, %v829
          %v846 = vpack.c.b16 %v830, %v830
          %v847 = vpack.c.b16 %v831, %v831
          %v848 = vpack.c.b16 %v832, %v832
          %865 = vst [vmem:[%s287] sm:$0xf] %v833
          %866 = vst [vmem:[%s287 + $0x4] sm:$0xf] %v834
          %867 = vst [vmem:[%s287 + $0x8] sm:$0xf] %v835
          %868 = vst [vmem:[%s287 + $0xc] sm:$0xf] %v836
          %869 = vst [vmem:[%s287 + $0x10] sm:$0xf] %v837
          %870 = vst [vmem:[%s287 + $0x14] sm:$0xf] %v838
          %871 = vst [vmem:[%s287 + $0x18] sm:$0xf] %v839
          %872 = vst [vmem:[%s287 + $0x1c] sm:$0xf] %v840
          %873 = vst [vmem:[%s287 + $0x20] sm:$0xf] %v841
          %874 = vst [vmem:[%s287 + $0x24] sm:$0xf] %v842
          %875 = vst [vmem:[%s287 + $0x28] sm:$0xf] %v843
          %876 = vst [vmem:[%s287 + $0x2c] sm:$0xf] %v844
          %877 = vst [vmem:[%s287 + $0x30] sm:$0xf] %v845
          %878 = vst [vmem:[%s287 + $0x34] sm:$0xf] %v846
          %879 = vst [vmem:[%s287 + $0x38] sm:$0xf] %v847
          %880 = vst [vmem:[%s287 + $0x3c] sm:$0xf] %v848
        $region52: #{tpu_custom_call.1} parent=35 // pred_fallthru
          _
        %s881 = sand.u32 %s148, 1
        %s882 = scalar_lea.sflag [#allocation5], %s881
        %s883 = sand.u32 %s148, 1
        %s884 = smul.addr %s883, 64
        %s885 = scalar_lea.vmem [#allocation8], %s884
        // Predicated region
        $region53: #{tpu_custom_call.1} parent=35 // pred_check
          %p886 = pneg %p158
        $region54: #{tpu_custom_call.1} parent=35 // pred_check_branch
          %888 = sbr.rel (%p886) target = $region56
        $region55: #{tpu_custom_call.1} parent=35 // pred_region
          %s889 = smul.u32 16, %s26
          %s891 = ssub.s32 1024, 1024
          %892 = vsyncadd %s882, %s891
          %s893 = smul.addr %s889, 64
          %s894 = scalar_lea.hbm %s4, %s893
          %s895 = sshll.u32 %s885, 4
          %s896 = int_to_ptr.vmem [resolvable:$true] %s895
          %901 = dma.vmem_to_hbm [thread:$0]  %s896, 1024, %s894, %s882, 64, 64, 4
        $region56: #{tpu_custom_call.1} parent=35 // pred_fallthru
          _
      $region36: #{tpu_custom_call.1} parent=5 // pred_fallthru
        _
      %p902 = scmp.le.s32.totalorder 2, %s17
      // Predicated region
      $region57: #{tpu_custom_call.1} parent=5 // pred_check
        %p903 = pneg %p902
      $region58: #{tpu_custom_call.1} parent=5 // pred_check_branch
        %905 = sbr.rel (%p903) target = $region60
      $region59: #{tpu_custom_call.1} parent=5 // pred_region
        %s906 = ssub.s32 %s17, 2
        // Predicated region
        $region61: #{tpu_custom_call.1} parent=59 // pred_check
          %p907 = pneg %p164
        $region62: #{tpu_custom_call.1} parent=59 // pred_check_branch
          %909 = sbr.rel (%p907) target = $region64
        $region63: #{tpu_custom_call.1} parent=59 // pred_region
          %s910 = sand.u32 %s149, 1
          %s911 = scalar_lea.sflag [#allocation5], %s910
          %s912 = sand.u32 %s149, 1
          %s913 = smul.addr %s912, 64
          %s914 = scalar_lea.vmem [#allocation8], %s913
          %915 = dma.done %s911, 1024
        $region64: #{tpu_custom_call.1} parent=59 // pred_fallthru
          _
      $region60: #{tpu_custom_call.1} parent=5 // pred_fallthru
        _
    $region6: #{tpu_custom_call.1} parent=1 // loop_footer
      %s21 = sadd.s32 1, %s17
    $region7: #{tpu_custom_call.1} parent=1 // loop_footer_branch
      %16 = sbr.rel target = $region3
    $region8: #{tpu_custom_call.1} parent=1 // loop_exit
      _
    %916 = vsyncpa [#allocation4], 1
    %s917 = scalar_lea.sflag [#allocation4], 1
    %918 = vsyncpa %s917, 1
    %919 = vsyncpa [#allocation7], 1
    %920 = vsyncpa [#allocation5], 1
    %s921 = scalar_lea.sflag [#allocation5], 1
    %922 = vsyncpa %s921, 1

</llo_original>
